<compile_context>
chip_gen: v7x
topology: tpu7x:2x2x1
jax: 0.10.0
libtpu: 0.0.40
codegen_flags: <defaults>
</compile_context>

<pallas_src>
import numpy as np
import jax
import jax.numpy as jnp
from jax import lax
from jax.experimental import pallas as pl
from jax.experimental.pallas import tpu as pltpu


def get_normalized_len_from_px_length(px_len, image_shape=(100, 100)):
    return px_len * (2.0 / image_shape[0])


def init_glimpse_params(image_shape, num_kernels, init_glimpse_window, init_sigma_px):
    """Deterministic parameter init matching GlimpseModel.init_kernel_parameters."""
    normalized_length = get_normalized_len_from_px_length(
        init_glimpse_window[0], image_shape
    )
    grid_size = int(np.sqrt(num_kernels))
    lin = np.linspace(-normalized_length / 2.0, normalized_length / 2.0, grid_size)
    gx, gy = np.meshgrid(lin, lin, indexing="ij")
    mu_init = np.stack([gx.flatten(), gy.flatten()], axis=-1).astype(np.float32)  # (K,2)
    sigma_init = (np.ones(num_kernels) * init_sigma_px / 10.0).astype(np.float32)  # (K,)
    return jnp.asarray(mu_init), jnp.asarray(sigma_init)


def _glimpse_kernel(params_ref, colc_ref, rowc_ref, img_ref, out_ref):
    # params_ref: (Bt, 3, Kp)  rows = (mu_x, mu_y, sigma)
    # colc_ref:   (Wp, 1)      grid_x value of each image column (sentinel-padded)
    # rowc_ref:   (Hp, 1)      grid_y value of each image row    (sentinel-padded)
    # img_ref:    (Bt, Hp, Wp) zero-padded images
    # out_ref:    (Bt, 1, Kp)
    Wp = colc_ref.shape[0]
    Hp = rowc_ref.shape[0]
    Kp = out_ref.shape[-1]
    bt = img_ref.shape[0]

    # Hoisted once per grid step (JAX does not CSE broadcast_in_dim; doing this
    # inside the batch loop would re-emit the cross-lane broadcast every iter).
    colc = jnp.broadcast_to(colc_ref[...], (Wp, Kp))   # (Wp, Kp)
    rowc = jnp.broadcast_to(rowc_ref[...], (Hp, Kp))   # (Hp, Kp)

    def body(b, carry):
        p = params_ref[b]                               # (3, Kp)
        mu_x = p[0:1]                                   # (1, Kp)
        mu_y = p[1:2]                                   # (1, Kp)
        sig = p[2:3]                                    # (1, Kp)

        # Hoist the divide out of the exponent: Kp divides instead of (W+H)*Kp
        # divides fighting the exps for the single EUP slot.
        scale = -0.5 / (sig * sig)                      # (1, Kp)

        # Separable Gaussian factors (padded rows underflow to exactly 0).
        kx = jnp.exp((colc - mu_x) ** 2 * scale)        # (Wp, Kp)
        ky = jnp.exp((rowc - mu_y) ** 2 * scale)        # (Hp, Kp)

        # sum_{ij} kx_j * ky_i = (sum_j kx_j) * (sum_i ky_i)
        den = jnp.sum(kx, axis=0, keepdims=True) * jnp.sum(ky, axis=0, keepdims=True)

        # Heavy H*W reduction on the MXU: a[i,k] = sum_j img[i,j] * kx[j,k]
        img_b = img_ref[b]                              # (Hp, Wp)
        a = jnp.dot(img_b, kx.astype(img_b.dtype),
                    preferred_element_type=jnp.float32)  # (Hp, Kp)
        num = jnp.sum(ky * a, axis=0, keepdims=True)     # (1, Kp)

        # Normalize AFTER the weighted reduction (algebraically identical to
        # torch's kernels /= (sum + 1e-7)). Lane-dense (Kp-wide) row store.
        out_ref[b] = num / (den + 1e-7)
        return carry

    lax.fori_loop(0, bt, body, None)


def glimpse_forward(imgs, s_c, s_z, mu_param, sigma_param, image_shape,
                    batch_tile=16, matmul_dtype=jnp.float32):
    B, H, W = imgs.shape
    assert (H, W) == tuple(image_shape)
    K = mu_param.shape[0]

    # Per-batch gaussian parameters (tiny glue, same math as the torch forward).
    mu = (s_c[:, None, :] + mu_param[None, :, :]) * s_z[:, None, :]       # (B, K, 2)
    # NOTE: torch calls get_normalized_len_from_px_length with the DEFAULT (100,100).
    sigma = get_normalized_len_from_px_length(sigma_param * 10.0) * s_z   # (B, K)

    # ---- Lane/sublane-dense padding ----------------------------------------
    K_pad = max(128, ((K + 127) // 128) * 128)   # lanes of params / MXU N dim / output
    W_pad = ((W + 127) // 128) * 128             # lanes of image / MXU contraction dim
    H_pad = ((H + 7) // 8) * 8                   # sublanes of image

    # Batch tile: >=2 grid steps when B>=2 (so the "parallel" axis can shard
    # across both TensorCores on v7x); capped so double-buffered image blocks
    # stay well inside the scoped-VMEM default on every generation.
    itemsize = np.dtype(matmul_dtype).itemsize
    img_block_bytes = H_pad * W_pad * itemsize
    Bt = int(min(batch_tile, max(1, (B + 1) // 2)))
    Bt = int(min(Bt, max(1, (12 * 1024 * 1024) // (2 * img_block_bytes))))
    B_pad = ((B + Bt - 1) // Bt) * Bt

    # Packed per-batch parameters (mu_x, mu_y, sigma): one small DMA per grid
    # step instead of three. Padded sigma entries are 1.0 to keep the math benign.
    f32 = jnp.float32
    mu_x = jnp.zeros((B_pad, K_pad), f32).at[:B, :K].set(mu[..., 0].astype(f32))
    mu_y = jnp.zeros((B_pad, K_pad), f32).at[:B, :K].set(mu[..., 1].astype(f32))
    sig = jnp.ones((B_pad, K_pad), f32).at[:B, :K].set(sigma.astype(f32))
    params = jnp.stack([mu_x, mu_y, sig], axis=1)                          # (B_pad, 3, K_pad)

    # Sampling grid, matching torch:
    #   x = linspace(-1,1,H); y = linspace(-1,1,W); grid_y, grid_x = meshgrid(x, y, 'ij')
    #   -> grid_x varies along width (values = linspace over image_shape[1]) and pairs
    #      with mu[...,0]; grid_y varies along height and pairs with mu[...,1].
    # Padded coordinates get a large sentinel so exp() underflows to exactly 0 and
    # padded rows/columns contribute nothing to num or den.
    SENTINEL = 1e6
    col_coord = jnp.full((W_pad, 1), SENTINEL, f32).at[:W, 0].set(
        jnp.linspace(-1.0, 1.0, image_shape[1], dtype=f32))
    row_coord = jnp.full((H_pad, 1), SENTINEL, f32).at[:H, 0].set(
        jnp.linspace(-1.0, 1.0, image_shape[0], dtype=f32))

    imgs_p = jnp.pad(imgs.astype(matmul_dtype),
                     ((0, B_pad - B), (0, H_pad - H), (0, W_pad - W)))

    # Explicit VMEM budget (double-buffered blocks + margin), capped safely below
    # v7x's 64 MiB physical VMEM.
    vmem_need = (2 * (Bt * img_block_bytes + Bt * 3 * K_pad * 4 + Bt * K_pad * 4)
                 + (H_pad + W_pad) * 128 * 4)
    vmem_limit = int(min(48 * 1024 * 1024, max(32 * 1024 * 1024, 2 * vmem_need)))

    out = pl.pallas_call(
        _glimpse_kernel,
        out_shape=jax.ShapeDtypeStruct((B_pad, 1, K_pad), jnp.float32),
        grid_spec=pltpu.PrefetchScalarGridSpec(
            num_scalar_prefetch=0,
            grid=(B_pad // Bt,),
            in_specs=[
                pl.BlockSpec((Bt, 3, K_pad), lambda b: (b, 0, 0)),      # packed params
                pl.BlockSpec((W_pad, 1), lambda b: (0, 0)),             # grid_x (columns)
                pl.BlockSpec((H_pad, 1), lambda b: (0, 0)),             # grid_y (rows)
                pl.BlockSpec((Bt, H_pad, W_pad), lambda b: (b, 0, 0)),  # images
            ],
            out_specs=pl.BlockSpec((Bt, 1, K_pad), lambda b: (b, 0, 0)),
        ),
        compiler_params=pltpu.CompilerParams(
            # Batch steps are fully independent -> shard across TensorCores on v7x.
            dimension_semantics=("parallel",),
            vmem_limit_bytes=vmem_limit,
        ),
    )(params, col_coord, row_coord, imgs_p)

    return out[:B, 0, :K]


def glimpse_reference(imgs, s_c, s_z, mu_param, sigma_param, image_shape):
    """Pure-JAX dense reference mirroring the torch code line-by-line."""
    B, H, W = imgs.shape
    K = mu_param.shape[0]
    x = jnp.linspace(-1.0, 1.0, image_shape[0], dtype=jnp.float32)
    y = jnp.linspace(-1.0, 1.0, image_shape[1], dtype=jnp.float32)
    grid_y, grid_x = jnp.meshgrid(x, y, indexing="ij")
    grid_x = grid_x[None, None]                                # (1,1,H,W)
    grid_y = grid_y[None, None]

    mu = (s_c[:, None, :] + mu_param[None, :, :]) * s_z[:, None, :]
    sigma = get_normalized_len_from_px_length(sigma_param * 10.0) * s_z
    sigma = sigma.reshape(B, K, 1, 1)
    kernels_x = jnp.exp(-0.5 * (grid_x - mu[..., 0].reshape(B, K, 1, 1)) ** 2 / sigma ** 2)
    kernels_y = jnp.exp(-0.5 * (grid_y - mu[..., 1].reshape(B, K, 1, 1)) ** 2 / sigma ** 2)
    kernels = kernels_x * kernels_y
    kernels = kernels / (kernels.sum(axis=(-2, -1), keepdims=True) + 1e-7)
    return (imgs[:, None] * kernels).sum(axis=(-2, -1))


if __name__ == "__main__":
    # Small, forward-consistent shapes. Non-square image and odd batch exercise
    # the H/W axis pairing and every padding path (K -> 128, W -> 128, H -> 16,
    # B -> B_pad with Bt=2 so the grid has 2 parallel steps).
    B = 3
    image_shape = (12, 20)      # (H, W), non-square
    num_kernels = 16            # perfect square, like the default 144
    init_glimpse_window = (8, 8)
    init_sigma = 2

    mu_param, sigma_param = init_glimpse_params(
        image_shape, num_kernels, init_glimpse_window, init_sigma
    )

    key = jax.random.PRNGKey(0)
    k1, k2, k3 = jax.random.split(key, 3)
    imgs = jax.random.uniform(k1, (B,) + image_shape, dtype=jnp.float32)
    s_c = 0.1 * jax.random.normal(k2, (B, 2), dtype=jnp.float32)
    s_z = 0.8 + 0.4 * jax.random.uniform(k3, (B, 1), dtype=jnp.float32)

    out = glimpse_forward(imgs, s_c, s_z, mu_param, sigma_param, image_shape)
    out = jax.block_until_ready(out)

    ref = glimpse_reference(imgs, s_c, s_z, mu_param, sigma_param, image_shape)
    np.testing.assert_allclose(np.asarray(out), np.asarray(ref), rtol=2e-4, atol=1e-5)

    print("KERNEL_OK")
</pallas_src>

<mosaic_0001>
module attributes {stable_mosaic.version = 11 : i64} {
  func.func @_glimpse_kernel(%arg0: i32, %arg1: memref<2x3x128xf32, #tpu.memory_space<vmem>>, %arg2: memref<128x1xf32, #tpu.memory_space<vmem>>, %arg3: memref<16x1xf32, #tpu.memory_space<vmem>>, %arg4: memref<2x16x128xf32, #tpu.memory_space<vmem>>, %arg5: memref<2x1x128xf32, #tpu.memory_space<vmem>>) attributes {dimension_semantics = [#tpu.dimension_semantics<parallel>], iteration_bounds = array<i64: 2>, scalar_prefetch = 0 : i64, scratch_operands = 0 : i64, tpu.core_type = #tpu.core_type<tc>, window_params = [{transform_indices = @transform_0, window_bounds = array<i64: 2, 3, 128>}, {pipeline_mode = #tpu.pipeline_mode<synchronous>, transform_indices = @transform_1, window_bounds = array<i64: 128, 1>}, {pipeline_mode = #tpu.pipeline_mode<synchronous>, transform_indices = @transform_2, window_bounds = array<i64: 16, 1>}, {transform_indices = @transform_3, window_bounds = array<i64: 2, 16, 128>}, {transform_indices = @transform_4, window_bounds = array<i64: 2, 1, 128>}]} {
    %c0 = arith.constant 0 : index
    %c0_0 = arith.constant 0 : index
    %0 = vector.load %arg2[%c0, %c0_0] : memref<128x1xf32, #tpu.memory_space<vmem>>, vector<128x1xf32>
    %1 = vector.shape_cast %0 : vector<128x1xf32> to vector<128x1xf32>
    %2 = vector.broadcast %1 : vector<128x1xf32> to vector<128x128xf32>
    %c0_1 = arith.constant 0 : index
    %c0_2 = arith.constant 0 : index
    %3 = vector.load %arg3[%c0_1, %c0_2] : memref<16x1xf32, #tpu.memory_space<vmem>>, vector<16x1xf32>
    %4 = vector.shape_cast %3 : vector<16x1xf32> to vector<16x1xf32>
    %5 = vector.broadcast %4 : vector<16x1xf32> to vector<16x128xf32>
    %c0_i32 = arith.constant 0 : i32
    %c2_i32 = arith.constant 2 : i32
    %6 = arith.addi %c0_i32, %c2_i32 : i32
    %c1_i32 = arith.constant 1 : i32
    scf.for %arg6 = %c0_i32 to %6 step %c1_i32  : i32 {
      %7 = arith.index_cast %arg6 : i32 to index
      %c0_4 = arith.constant 0 : index
      %c0_5 = arith.constant 0 : index
      %8 = vector.load %arg1[%7, %c0_4, %c0_5] : memref<2x3x128xf32, #tpu.memory_space<vmem>>, vector<1x3x128xf32>
      %9 = vector.shape_cast %8 : vector<1x3x128xf32> to vector<3x128xf32>
      %10 = vector.extract_strided_slice %9 {offsets = [0, 0], sizes = [1, 128], strides = [1, 1]} : vector<3x128xf32> to vector<1x128xf32>
      %11 = vector.extract_strided_slice %9 {offsets = [1, 0], sizes = [1, 128], strides = [1, 1]} : vector<3x128xf32> to vector<1x128xf32>
      %12 = vector.extract_strided_slice %9 {offsets = [2, 0], sizes = [1, 128], strides = [1, 1]} : vector<3x128xf32> to vector<1x128xf32>
      %13 = arith.mulf %12, %12 : vector<1x128xf32>
      %cst = arith.constant -5.000000e-01 : f32
      %14 = vector.broadcast %cst : f32 to vector<1x128xf32>
      %15 = arith.divf %14, %13 : vector<1x128xf32>
      %16 = vector.broadcast %10 : vector<1x128xf32> to vector<128x128xf32>
      %17 = arith.subf %2, %16 : vector<128x128xf32>
      %18 = arith.mulf %17, %17 : vector<128x128xf32>
      %19 = vector.broadcast %15 : vector<1x128xf32> to vector<128x128xf32>
      %20 = arith.mulf %18, %19 : vector<128x128xf32>
      %21 = math.exp %20 : vector<128x128xf32>
      %22 = vector.broadcast %11 : vector<1x128xf32> to vector<16x128xf32>
      %23 = arith.subf %5, %22 : vector<16x128xf32>
      %24 = arith.mulf %23, %23 : vector<16x128xf32>
      %25 = vector.broadcast %15 : vector<1x128xf32> to vector<16x128xf32>
      %26 = arith.mulf %24, %25 : vector<16x128xf32>
      %27 = math.exp %26 : vector<16x128xf32>
      %cst_6 = arith.constant dense<0.000000e+00> : vector<128xf32>
      %28 = vector.multi_reduction <add>, %21, %cst_6 [0] : vector<128x128xf32> to vector<128xf32>
      %29 = vector.shape_cast %28 : vector<128xf32> to vector<1x128xf32>
      %cst_7 = arith.constant dense<0.000000e+00> : vector<128xf32>
      %30 = vector.multi_reduction <add>, %27, %cst_7 [0] : vector<16x128xf32> to vector<128xf32>
      %31 = vector.shape_cast %30 : vector<128xf32> to vector<1x128xf32>
      %32 = arith.mulf %29, %31 : vector<1x128xf32>
      %33 = arith.index_cast %arg6 : i32 to index
      %c0_8 = arith.constant 0 : index
      %c0_9 = arith.constant 0 : index
      %34 = vector.load %arg4[%33, %c0_8, %c0_9] : memref<2x16x128xf32, #tpu.memory_space<vmem>>, vector<1x16x128xf32>
      %35 = vector.shape_cast %34 : vector<1x16x128xf32> to vector<16x128xf32>
      %cst_10 = arith.constant dense<0.000000e+00> : vector<16x128xf32>
      %36 = tpu.matmul %35, %21, %cst_10 {dimension_numbers = #tpu.dot_dimension_numbers<[1], [0], [0], [1], [0, 0, 1, 1], [], []>} : vector<16x128xf32>, vector<128x128xf32>, vector<16x128xf32> -> vector<16x128xf32>
      %37 = arith.mulf %27, %36 : vector<16x128xf32>
      %cst_11 = arith.constant dense<0.000000e+00> : vector<128xf32>
      %38 = vector.multi_reduction <add>, %37, %cst_11 [0] : vector<16x128xf32> to vector<128xf32>
      %39 = vector.shape_cast %38 : vector<128xf32> to vector<1x128xf32>
      %cst_12 = arith.constant 1.000000e-07 : f32
      %40 = vector.broadcast %cst_12 : f32 to vector<1x128xf32>
      %41 = arith.addf %32, %40 : vector<1x128xf32>
      %42 = arith.divf %39, %41 : vector<1x128xf32>
      %43 = arith.index_cast %arg6 : i32 to index
      %c0_13 = arith.constant 0 : index
      %c0_14 = arith.constant 0 : index
      %44 = vector.load %arg5[%43, %c0_13, %c0_14] : memref<2x1x128xf32, #tpu.memory_space<vmem>>, vector<1x1x128xf32>
      %45 = vector.shape_cast %44 : vector<1x1x128xf32> to vector<1x128xf32>
      %46 = vector.shape_cast %42 : vector<1x128xf32> to vector<1x1x128xf32>
      tpu.vector_store %arg5[%43, %c0_13, %c0_14], %46 {strides = array<i32>} : memref<2x1x128xf32, #tpu.memory_space<vmem>>, vector<1x1x128xf32>,
    }
    %c2_i32_3 = arith.constant 2 : i32
    return
  }
  func.func @transform_0(%arg0: i32) -> (i32, i32, i32) {
    %c0_i32 = arith.constant 0 : i32
    %c0_i32_0 = arith.constant 0 : i32
    %c0_i32_1 = arith.constant 0 : i32
    return %arg0, %c0_i32, %c0_i32_0 : i32, i32, i32
  }
  func.func @transform_1(%arg0: i32) -> (i32, i32) {
    %c0_i32 = arith.constant 0 : i32
    %c0_i32_0 = arith.constant 0 : i32
    %c0_i32_1 = arith.constant 0 : i32
    return %c0_i32, %c0_i32_0 : i32, i32
  }
  func.func @transform_2(%arg0: i32) -> (i32, i32) {
    %c0_i32 = arith.constant 0 : i32
    %c0_i32_0 = arith.constant 0 : i32
    %c0_i32_1 = arith.constant 0 : i32
    return %c0_i32, %c0_i32_0 : i32, i32
  }
  func.func @transform_3(%arg0: i32) -> (i32, i32, i32) {
    %c0_i32 = arith.constant 0 : i32
    %c0_i32_0 = arith.constant 0 : i32
    %c0_i32_1 = arith.constant 0 : i32
    return %arg0, %c0_i32, %c0_i32_0 : i32, i32, i32
  }
  func.func @transform_4(%arg0: i32) -> (i32, i32, i32) {
    %c0_i32 = arith.constant 0 : i32
    %c0_i32_0 = arith.constant 0 : i32
    %c0_i32_1 = arith.constant 0 : i32
    return %arg0, %c0_i32, %c0_i32_0 : i32, i32, i32
  }
}

</mosaic_0001>

<llo_original>
// kernel: tpu_custom_call.1
$region0: #{tpu_custom_call.1}
  #allocation0 [shape = 'u32[]', space=smem, size = 0x4, offset = 0x4, fixed_abs, tag = 'smem constant byte address 0x4 - core index']
  #allocation1 [shape = 'u32[144,128]{1,0:T(1,128)}', space=vmem, size = 0x12000, scoped, tag = 'internal scratch']
  %s0 = inlined_call_operand.vmem [shape: f32[4,3,128], index: 0, kind: input, shape index: {}]
  %s1 = inlined_call_operand.vmem [shape: f32[128,1], index: 1, kind: input, shape index: {}]
  %s2 = inlined_call_operand.vmem [shape: f32[16,1], index: 2, kind: input, shape index: {}]
  %s3 = inlined_call_operand.vmem [shape: f32[4,16,128], index: 3, kind: input, shape index: {}]
  %s4 = inlined_call_operand.hbm [shape: f32[4,1,128], index: 4, kind: output, shape index: {}]
  %s5 = sld [smem:[#allocation0]]
  $region56: #{tpu_custom_call.1} parent=0
    _
  %s7 = ssub.s32 1, %s5
  %s8 = scalar_select 0, %s7, %s5
  $region1: #{tpu_custom_call.1} parent=0
    #allocation2 [shape = 'u8[2048]{0}', space=vmem, size = 0x800, scoped, tag = 'output window, operand 0']
    #allocation3 [shape = 's32[2]{0}', space=sflag, size = 0x8, scoped, tag = 'scoped memory for tpu_custom_call.1']
    %9 = vsyncpa [#allocation3], 0
    %s10 = scalar_lea.sflag [#allocation3], 1
    %11 = vsyncpa %s10, 0
    loop: start=0, step=1, limit=4
    $region2: #{tpu_custom_call.1} parent=1 // loop_pre_header
      _
    $region3: #{tpu_custom_call.1} parent=1 // loop_header
      %s13 = sphi 0, %s17
      %p14 = scmp.ge.s32.totalorder %s13, 4
      %s23 = sphi 0, %s25
      %s26 = sphi 0, %s23
      %s27 = sphi 0, %s26
      %s43 = sphi 0, %s27
      %s47 = sphi 0, %s47
      %s49 = sphi 0, %s47
      %s50 = sphi 0, %s49
      %s64 = sphi 0, %s50
      %s68 = sphi 0, %s68
      %s70 = sphi 0, %s68
      %s71 = sphi 0, %s70
      %s85 = sphi 0, %s71
      %s91 = sphi 0, %s93
      %s94 = sphi 0, %s91
      %s95 = sphi 0, %s94
      %s111 = sphi 0, %s95
      %s117 = sphi 0, %s119
      %s120 = sphi 0, %s117
      %s121 = sphi 0, %s120
      %s137 = sphi 0, %s121
    $region4: #{tpu_custom_call.1} parent=1 // loop_header_branch
      %16 = sbr.rel (%p14) target = $region8
    $region5: #{tpu_custom_call.1} parent=1 // loop_body
      %s18 = ssub.s32 %s13, 1
      %s19 = ssub.s32 %s13, 2
      %s20 = sadd.s32 %s13, 1
      %s21 = ssub.s32 %s13, %s20
      %p22 = scmp.eq.s32.totalorder %s21, 0
      %s24 = sadd.s32 %s23, 1
      %s25 = scalar_select %p22, %s23, %s24
      %p28 = pneg %p22
      %p29 = scmp.eq.s32.totalorder %s13, 1
      %p30 = por %p28, %p29
      %p31 = scmp.ne.s32.totalorder %s23, %s26
      %p32 = scmp.eq.s32.totalorder %s13, 0
      %p33 = por %p31, %p32
      %p34 = scmp.ne.s32.totalorder %s23, %s26
      %p35 = scmp.eq.s32.totalorder %s18, 1
      %p36 = por %p34, %p35
      %p37 = scmp.ne.s32.totalorder %s26, %s27
      %p38 = scmp.eq.s32.totalorder %s18, 0
      %p39 = por %p37, %p38
      %p40 = scmp.ne.s32.totalorder %s26, %s27
      %p41 = scmp.eq.s32.totalorder %s19, 1
      %p42 = por %p40, %p41
      %p44 = scmp.ne.s32.totalorder %s27, %s43
      %p45 = scmp.eq.s32.totalorder %s19, 0
      %p46 = por %p44, %p45
      %s48 = sadd.s32 %s47, 1
      %p51 = scmp.eq.s32.totalorder %s13, 1
      %p52 = scmp.ne.s32.totalorder %s47, %s49
      %p53 = scmp.eq.s32.totalorder %s13, 0
      %p54 = por %p52, %p53
      %p55 = scmp.ne.s32.totalorder %s47, %s49
      %p56 = scmp.eq.s32.totalorder %s18, 1
      %p57 = por %p55, %p56
      %p58 = scmp.ne.s32.totalorder %s49, %s50
      %p59 = scmp.eq.s32.totalorder %s18, 0
      %p60 = por %p58, %p59
      %p61 = scmp.ne.s32.totalorder %s49, %s50
      %p62 = scmp.eq.s32.totalorder %s19, 1
      %p63 = por %p61, %p62
      %p65 = scmp.ne.s32.totalorder %s50, %s64
      %p66 = scmp.eq.s32.totalorder %s19, 0
      %p67 = por %p65, %p66
      %s69 = sadd.s32 %s68, 1
      %p72 = scmp.eq.s32.totalorder %s13, 1
      %p73 = scmp.ne.s32.totalorder %s68, %s70
      %p74 = scmp.eq.s32.totalorder %s13, 0
      %p75 = por %p73, %p74
      %p76 = scmp.ne.s32.totalorder %s68, %s70
      %p77 = scmp.eq.s32.totalorder %s18, 1
      %p78 = por %p76, %p77
      %p79 = scmp.ne.s32.totalorder %s70, %s71
      %p80 = scmp.eq.s32.totalorder %s18, 0
      %p81 = por %p79, %p80
      %p82 = scmp.ne.s32.totalorder %s70, %s71
      %p83 = scmp.eq.s32.totalorder %s19, 1
      %p84 = por %p82, %p83
      %p86 = scmp.ne.s32.totalorder %s71, %s85
      %p87 = scmp.eq.s32.totalorder %s19, 0
      %p88 = por %p86, %p87
      %s89 = ssub.s32 %s13, %s20
      %p90 = scmp.eq.s32.totalorder %s89, 0
      %s92 = sadd.s32 %s91, 1
      %s93 = scalar_select %p90, %s91, %s92
      %p96 = pneg %p90
      %p97 = scmp.eq.s32.totalorder %s13, 1
      %p98 = por %p96, %p97
      %p99 = scmp.ne.s32.totalorder %s91, %s94
      %p100 = scmp.eq.s32.totalorder %s13, 0
      %p101 = por %p99, %p100
      %p102 = scmp.ne.s32.totalorder %s91, %s94
      %p103 = scmp.eq.s32.totalorder %s18, 1
      %p104 = por %p102, %p103
      %p105 = scmp.ne.s32.totalorder %s94, %s95
      %p106 = scmp.eq.s32.totalorder %s18, 0
      %p107 = por %p105, %p106
      %p108 = scmp.ne.s32.totalorder %s94, %s95
      %p109 = scmp.eq.s32.totalorder %s19, 1
      %p110 = por %p108, %p109
      %p112 = scmp.ne.s32.totalorder %s95, %s111
      %p113 = scmp.eq.s32.totalorder %s19, 0
      %p114 = por %p112, %p113
      %s115 = ssub.s32 %s13, %s20
      %p116 = scmp.eq.s32.totalorder %s115, 0
      %s118 = sadd.s32 %s117, 1
      %s119 = scalar_select %p116, %s117, %s118
      %p122 = pneg %p116
      %p123 = scmp.eq.s32.totalorder %s13, 1
      %p124 = por %p122, %p123
      %p125 = scmp.ne.s32.totalorder %s117, %s120
      %p126 = scmp.eq.s32.totalorder %s13, 0
      %p127 = por %p125, %p126
      %p128 = scmp.ne.s32.totalorder %s117, %s120
      %p129 = scmp.eq.s32.totalorder %s18, 1
      %p130 = por %p128, %p129
      %p131 = scmp.ne.s32.totalorder %s120, %s121
      %p132 = scmp.eq.s32.totalorder %s18, 0
      %p133 = por %p131, %p132
      %p134 = scmp.ne.s32.totalorder %s120, %s121
      %p135 = scmp.eq.s32.totalorder %s19, 1
      %p136 = por %p134, %p135
      %p138 = scmp.ne.s32.totalorder %s121, %s137
      %p139 = scmp.eq.s32.totalorder %s19, 0
      %p140 = por %p138, %p139
      %p141 = scmp.le.s32.totalorder 1, %s13
      %p142 = scmp.lt.s32.totalorder %s13, 3
      %p143 = pnand %p141, %p142
      %p144 = pneg %p143
      // Predicated region
      $region9: #{tpu_custom_call.1} parent=5 // pred_check
        _
      $region10: #{tpu_custom_call.1} parent=5 // pred_check_branch
        %146 = sbr.rel (%p143) target = $region12
      $region11: #{tpu_custom_call.1} parent=5 // pred_region
        %s147 = ssub.s32 %s13, 1
        // Predicated region
        $region13: #{tpu_custom_call.1} parent=11 // pred_check
          %p148 = pneg %p60
        $region14: #{tpu_custom_call.1} parent=11 // pred_check_branch
          %150 = sbr.rel (%p148) target = $region16
        $region15: #{tpu_custom_call.1} parent=11 // pred_region
          _
        $region16: #{tpu_custom_call.1} parent=11 // pred_fallthru
          _
        // Predicated region
        $region17: #{tpu_custom_call.1} parent=11 // pred_check
          %p151 = pneg %p81
        $region18: #{tpu_custom_call.1} parent=11 // pred_check_branch
          %153 = sbr.rel (%p151) target = $region20
        $region19: #{tpu_custom_call.1} parent=11 // pred_region
          _
        $region20: #{tpu_custom_call.1} parent=11 // pred_fallthru
          _
      $region12: #{tpu_custom_call.1} parent=5 // pred_fallthru
        _
      %p154 = scmp.lt.s32.totalorder %s13, 2
      // Predicated region
      $region21: #{tpu_custom_call.1} parent=5 // pred_check
        %p155 = pneg %p154
      $region22: #{tpu_custom_call.1} parent=5 // pred_check_branch
        %157 = sbr.rel (%p155) target = $region24
      $region23: #{tpu_custom_call.1} parent=5 // pred_region
        // Predicated region
        $region25: #{tpu_custom_call.1} parent=23 // pred_check
          %p158 = pneg %p33
        $region26: #{tpu_custom_call.1} parent=23 // pred_check_branch
          %160 = sbr.rel (%p158) target = $region28
        $region27: #{tpu_custom_call.1} parent=23 // pred_region
          %s161 = smul.u32 2, %s13
          %p162 = scmp.lt.s32.totalorder %s161, 3
          %s163 = scalar_select %p162, %s161, 3
          %s164 = smul.addr %s163, 4
          %s165 = scalar_lea.vmem %s0, %s164
          %s166 = smul.u32 2, %s13
        $region28: #{tpu_custom_call.1} parent=23 // pred_fallthru
          _
        // Predicated region
        $region29: #{tpu_custom_call.1} parent=23 // pred_check
          %p167 = pneg %p101
        $region30: #{tpu_custom_call.1} parent=23 // pred_check_branch
          %169 = sbr.rel (%p167) target = $region32
        $region31: #{tpu_custom_call.1} parent=23 // pred_region
          %s170 = smul.u32 2, %s13
          %p171 = scmp.lt.s32.totalorder %s170, 3
          %s172 = scalar_select %p171, %s170, 3
          %s173 = smul.addr %s172, 2
          %s174 = smul.addr %s173, 8
          %s175 = scalar_lea.vmem %s3, %s174
          %s176 = smul.u32 2, %s13
        $region32: #{tpu_custom_call.1} parent=23 // pred_fallthru
          _
      $region24: #{tpu_custom_call.1} parent=5 // pred_fallthru
        _
      %p177 = scmp.le.s32.totalorder 1, %s13
      %p178 = scmp.lt.s32.totalorder %s13, 3
      %p179 = pnand %p177, %p178
      %p180 = pneg %p179
      // Predicated region
      $region33: #{tpu_custom_call.1} parent=5 // pred_check
        _
      $region34: #{tpu_custom_call.1} parent=5 // pred_check_branch
        %182 = sbr.rel (%p179) target = $region36
      $region35: #{tpu_custom_call.1} parent=5 // pred_region
        %s183 = ssub.s32 %s13, 1
        %s184 = smul.u32 2, %s18
        %p185 = scmp.lt.s32.totalorder %s184, 3
        %s186 = scalar_select %p185, %s184, 3
        %s187 = smul.addr %s186, 4
        %s188 = scalar_lea.vmem %s0, %s187
        %p189 = pneg %p39
        %p190 = pneg %p36
        %p191 = pneg %p60
        %p192 = pneg %p57
        %p193 = pneg %p81
        %p194 = pneg %p78
        %s195 = smul.u32 2, %s18
        %p196 = scmp.lt.s32.totalorder %s195, 3
        %s197 = scalar_select %p196, %s195, 3
        %s198 = smul.addr %s197, 2
        %s199 = smul.addr %s198, 8
        %s200 = scalar_lea.vmem %s3, %s199
        %p201 = pneg %p107
        %p202 = pneg %p104
        %p203 = pneg %p133
        %p204 = pneg %p130
        %s205 = sand.u32 %s120, 1
        %s206 = scalar_lea.sflag [#allocation3], %s205
        %s207 = sand.u32 %s120, 1
        %s208 = smul.addr %s207, 2
        %s209 = scalar_lea.vmem [#allocation2], %s208
        %s210 = smul.u32 2, %s18
        %p211 = scmp.lt.s32.totalorder %s210, 3
        %s212 = scalar_select %p211, %s210, 3
        %s213 = smul.addr %s212, 4
        %s214 = scalar_lea.vmem %s0, %s213
        %s215 = smul.u32 2, %s18
        %s216 = smul.u32 2, %s18
        %p217 = scmp.lt.s32.totalorder %s216, 3
        %s218 = scalar_select %p217, %s216, 3
        %s219 = smul.addr %s218, 2
        %s220 = smul.addr %s219, 8
        %s221 = scalar_lea.vmem %s3, %s220
        %s222 = smul.u32 2, %s18
        %s223 = smul.u32 2, %s18
        %v224 = vld [vmem:[%s1] sm:$0xff]
        %v225 = vld [vmem:[%s1 + $0x8] sm:$0xff]
        %v226 = vld [vmem:[%s1 + $0x10] sm:$0xff]
        %v227 = vld [vmem:[%s1 + $0x18] sm:$0xff]
        %v228 = vld [vmem:[%s1 + $0x20] sm:$0xff]
        %v229 = vld [vmem:[%s1 + $0x28] sm:$0xff]
        %v230 = vld [vmem:[%s1 + $0x30] sm:$0xff]
        %v231 = vld [vmem:[%s1 + $0x38] sm:$0xff]
        %v232 = vld [vmem:[%s1 + $0x40] sm:$0xff]
        %v233 = vld [vmem:[%s1 + $0x48] sm:$0xff]
        %v234 = vld [vmem:[%s1 + $0x50] sm:$0xff]
        %v235 = vld [vmem:[%s1 + $0x58] sm:$0xff]
        %v236 = vld [vmem:[%s1 + $0x60] sm:$0xff]
        %v237 = vld [vmem:[%s1 + $0x68] sm:$0xff]
        %v238 = vld [vmem:[%s1 + $0x70] sm:$0xff]
        %v239 = vld [vmem:[%s1 + $0x78] sm:$0xff]
        %241 = vset.pattern.permute.xlu0 0
        %242 = vperm.xlu0 %241, %v224
        %v243 = vpop.permute.xlu0 %242
        %246 = vset.pattern.permute.xlu0 0
        %247 = vperm.xlu0 %246, %v225
        %v248 = vpop.permute.xlu0 %247
        %251 = vset.pattern.permute.xlu0 0
        %252 = vperm.xlu0 %251, %v226
        %v253 = vpop.permute.xlu0 %252
        %256 = vset.pattern.permute.xlu0 0
        %257 = vperm.xlu0 %256, %v227
        %v258 = vpop.permute.xlu0 %257
        %261 = vset.pattern.permute.xlu0 0
        %262 = vperm.xlu0 %261, %v228
        %v263 = vpop.permute.xlu0 %262
        %266 = vset.pattern.permute.xlu0 0
        %267 = vperm.xlu0 %266, %v229
        %v268 = vpop.permute.xlu0 %267
        %271 = vset.pattern.permute.xlu0 0
        %272 = vperm.xlu0 %271, %v230
        %v273 = vpop.permute.xlu0 %272
        %276 = vset.pattern.permute.xlu0 0
        %277 = vperm.xlu0 %276, %v231
        %v278 = vpop.permute.xlu0 %277
        %281 = vset.pattern.permute.xlu0 0
        %282 = vperm.xlu0 %281, %v232
        %v283 = vpop.permute.xlu0 %282
        %286 = vset.pattern.permute.xlu0 0
        %287 = vperm.xlu0 %286, %v233
        %v288 = vpop.permute.xlu0 %287
        %291 = vset.pattern.permute.xlu0 0
        %292 = vperm.xlu0 %291, %v234
        %v293 = vpop.permute.xlu0 %292
        %296 = vset.pattern.permute.xlu0 0
        %297 = vperm.xlu0 %296, %v235
        %v298 = vpop.permute.xlu0 %297
        %301 = vset.pattern.permute.xlu0 0
        %302 = vperm.xlu0 %301, %v236
        %v303 = vpop.permute.xlu0 %302
        %306 = vset.pattern.permute.xlu0 0
        %307 = vperm.xlu0 %306, %v237
        %v308 = vpop.permute.xlu0 %307
        %311 = vset.pattern.permute.xlu0 0
        %312 = vperm.xlu0 %311, %v238
        %v313 = vpop.permute.xlu0 %312
        %316 = vset.pattern.permute.xlu0 0
        %317 = vperm.xlu0 %316, %v239
        %v318 = vpop.permute.xlu0 %317
        %v320 = vld [vmem:[%s2] sm:$0xff]
        %v321 = vld [vmem:[%s2 + $0x8] sm:$0xff]
        %323 = vset.pattern.permute.xlu0 0
        %324 = vperm.xlu0 %323, %v320
        %v325 = vpop.permute.xlu0 %324
        %328 = vset.pattern.permute.xlu0 0
        %329 = vperm.xlu0 %328, %v321
        %v330 = vpop.permute.xlu0 %329
        loop: start=0, step=1, limit=2
        $region37: #{tpu_custom_call.1} parent=35 // loop_pre_header
          _
        $region38: #{tpu_custom_call.1} parent=35 // loop_header
          %s333 = sphi 0, %s337
          %p334 = scmp.ge.s32.totalorder %s333, 2
        $region39: #{tpu_custom_call.1} parent=35 // loop_header_branch
          %336 = sbr.rel (%p334) target = $region43
        $region40: #{tpu_custom_call.1} parent=35 // loop_body
          %s338 = smul.u32 %s333, 4
          %s339 = scalar_lea.vmem %s214, %s338
          %v340 = vld [vmem:[%s339] sm:$0x7]
          %v341 = vmul.f32 %v340, %v340
          %v342 = vrcp.pop %v341
          %v343 = vmul.f32 -0.5, %v342
          %v344 = vlaneseq
          %v345 = vshrl.u32 %v344, 7
          %v346 = vsub.s32 0, %v345
          %v347 = vrot.slane %v340, %v346
          %v348 = vsub.f32 %v243, %v347
          %v349 = vsub.f32 %v248, %v347
          %v350 = vsub.f32 %v253, %v347
          %v351 = vsub.f32 %v258, %v347
          %v352 = vsub.f32 %v263, %v347
          %v353 = vsub.f32 %v268, %v347
          %v354 = vsub.f32 %v273, %v347
          %v355 = vsub.f32 %v278, %v347
          %v356 = vsub.f32 %v283, %v347
          %v357 = vsub.f32 %v288, %v347
          %v358 = vsub.f32 %v293, %v347
          %v359 = vsub.f32 %v298, %v347
          %v360 = vsub.f32 %v303, %v347
          %v361 = vsub.f32 %v308, %v347
          %v362 = vsub.f32 %v313, %v347
          %v363 = vsub.f32 %v318, %v347
          %v364 = vmul.f32 %v348, %v348
          %v365 = vmul.f32 %v349, %v349
          %v366 = vmul.f32 %v350, %v350
          %v367 = vmul.f32 %v351, %v351
          %v368 = vmul.f32 %v352, %v352
          %v369 = vmul.f32 %v353, %v353
          %v370 = vmul.f32 %v354, %v354
          %v371 = vmul.f32 %v355, %v355
          %v372 = vmul.f32 %v356, %v356
          %v373 = vmul.f32 %v357, %v357
          %v374 = vmul.f32 %v358, %v358
          %v375 = vmul.f32 %v359, %v359
          %v376 = vmul.f32 %v360, %v360
          %v377 = vmul.f32 %v361, %v361
          %v378 = vmul.f32 %v362, %v362
          %v379 = vmul.f32 %v363, %v363
          %v380 = vlaneseq
          %v381 = vshrl.u32 %v380, 7
          %v382 = vsub.s32 2, %v381
          %v383 = vrot.slane %v343, %v382
          %v384 = vmul.f32 %v364, %v383
          %v385 = vmul.f32 %v365, %v383
          %v386 = vmul.f32 %v366, %v383
          %v387 = vmul.f32 %v367, %v383
          %v388 = vmul.f32 %v368, %v383
          %v389 = vmul.f32 %v369, %v383
          %v390 = vmul.f32 %v370, %v383
          %v391 = vmul.f32 %v371, %v383
          %v392 = vmul.f32 %v372, %v383
          %v393 = vmul.f32 %v373, %v383
          %v394 = vmul.f32 %v374, %v383
          %v395 = vmul.f32 %v375, %v383
          %v396 = vmul.f32 %v376, %v383
          %v397 = vmul.f32 %v377, %v383
          %v398 = vmul.f32 %v378, %v383
          %v399 = vmul.f32 %v379, %v383
          %v400 = vmul.f32 %v384, 1.442695
          %v401 = vpow.pop %v400
          %v402 = vmul.f32 %v385, 1.442695
          %v403 = vpow.pop %v402
          %v404 = vmul.f32 %v386, 1.442695
          %v405 = vpow.pop %v404
          %v406 = vmul.f32 %v387, 1.442695
          %v407 = vpow.pop %v406
          %v408 = vmul.f32 %v388, 1.442695
          %v409 = vpow.pop %v408
          %v410 = vmul.f32 %v389, 1.442695
          %v411 = vpow.pop %v410
          %v412 = vmul.f32 %v390, 1.442695
          %v413 = vpow.pop %v412
          %v414 = vmul.f32 %v391, 1.442695
          %v415 = vpow.pop %v414
          %v416 = vmul.f32 %v392, 1.442695
          %v417 = vpow.pop %v416
          %v418 = vmul.f32 %v393, 1.442695
          %v419 = vpow.pop %v418
          %v420 = vmul.f32 %v394, 1.442695
          %v421 = vpow.pop %v420
          %v422 = vmul.f32 %v395, 1.442695
          %v423 = vpow.pop %v422
          %v424 = vmul.f32 %v396, 1.442695
          %v425 = vpow.pop %v424
          %v426 = vmul.f32 %v397, 1.442695
          %v427 = vpow.pop %v426
          %v428 = vmul.f32 %v398, 1.442695
          %v429 = vpow.pop %v428
          %v430 = vmul.f32 %v399, 1.442695
          %v431 = vpow.pop %v430
          %v432 = vlaneseq
          %v433 = vshrl.u32 %v432, 7
          %v434 = vsub.s32 1, %v433
          %v435 = vrot.slane %v340, %v434
          %v436 = vsub.f32 %v325, %v435
          %v437 = vsub.f32 %v330, %v435
          %v438 = vmul.f32 %v436, %v436
          %v439 = vmul.f32 %v437, %v437
          %v440 = vmul.f32 %v438, %v383
          %v441 = vmul.f32 %v439, %v383
          %v442 = vmul.f32 %v440, 1.442695
          %v443 = vpow.pop %v442
          %v444 = vmul.f32 %v441, 1.442695
          %v445 = vpow.pop %v444
          %v446 = vadd.f32 %v401, %v403
          %v447 = vadd.f32 %v446, %v405
          %v448 = vadd.f32 %v447, %v407
          %v449 = vadd.f32 %v448, %v409
          %v450 = vadd.f32 %v449, %v411
          %v451 = vadd.f32 %v450, %v413
          %v452 = vadd.f32 %v451, %v415
          %v453 = vadd.f32 %v452, %v417
          %v454 = vadd.f32 %v453, %v419
          %v455 = vadd.f32 %v454, %v421
          %v456 = vadd.f32 %v455, %v423
          %v457 = vadd.f32 %v456, %v425
          %v458 = vadd.f32 %v457, %v427
          %v459 = vadd.f32 %v458, %v429
          %v460 = vadd.f32 %v459, %v431
          %v461 = vrot.slane %v460, 4
          %v462 = vadd.f32 %v460, %v461
          %v463 = vrot.slane %v462, 2
          %v464 = vadd.f32 %v462, %v463
          %v465 = vrot.slane %v464, 1
          %v466 = vadd.f32 %v464, %v465
          %v467 = vadd.f32 %v443, %v445
          %v468 = vrot.slane %v467, 4
          %v469 = vadd.f32 %v467, %v468
          %v470 = vrot.slane %v469, 2
          %v471 = vadd.f32 %v469, %v470
          %v472 = vrot.slane %v471, 1
          %v473 = vadd.f32 %v471, %v472
          %v474 = vmul.f32 %v466, %v473
          %s475 = smul.u32 %s333, 16
          %s476 = scalar_lea.vmem %s221, %s475
          %v477 = vld [vmem:[%s476] sm:$0xff]
          %v478 = vld [vmem:[%s476 + $0x8] sm:$0xff]
          %479 = vmatprep.subr.mxu0 0.0
          %480 = vmatpush1.msra.mxu0 %v401
          %481 = vmatprep.subr.mxu0 0.0
          %482 = vmatpush1.msra.mxu0 %v403
          %483 = vmatprep.subr.mxu0 0.0
          %484 = vmatpush1.msra.mxu0 %v405
          %485 = vmatprep.subr.mxu0 0.0
          %486 = vmatpush1.msra.mxu0 %v407
          %487 = vmatprep.subr.mxu0 0.0
          %488 = vmatpush1.msra.mxu0 %v409
          %489 = vmatprep.subr.mxu0 0.0
          %490 = vmatpush1.msra.mxu0 %v411
          %491 = vmatprep.subr.mxu0 0.0
          %492 = vmatpush1.msra.mxu0 %v413
          %493 = vmatprep.subr.mxu0 0.0
          %494 = vmatpush1.msra.mxu0 %v415
          %495 = vmatprep.subr.mxu0 0.0
          %496 = vmatpush1.msra.mxu0 %v417
          %497 = vmatprep.subr.mxu0 0.0
          %498 = vmatpush1.msra.mxu0 %v419
          %499 = vmatprep.subr.mxu0 0.0
          %500 = vmatpush1.msra.mxu0 %v421
          %501 = vmatprep.subr.mxu0 0.0
          %502 = vmatpush1.msra.mxu0 %v423
          %503 = vmatprep.subr.mxu0 0.0
          %504 = vmatpush1.msra.mxu0 %v425
          %505 = vmatprep.subr.mxu0 0.0
          %506 = vmatpush1.msra.mxu0 %v427
          %507 = vmatprep.subr.mxu0 0.0
          %508 = vmatpush1.msra.mxu0 %v429
          %509 = vmatprep.subr.mxu0 0.0
          %510 = vmatpush1.msra.mxu0 %v431
          %511 = vmatprep.subr.mxu0 0.0
          %512 = vmatpush1.msra.mxu0 0.0
          %513 = vmatprep.subr.mxu0 0.0
          %514 = vmatpush1.msra.mxu0 0.0
          %515 = vmatprep.subr.mxu0 0.0
          %516 = vmatpush1.msra.mxu0 0.0
          %517 = vmatprep.subr.mxu0 0.0
          %518 = vmatpush1.msra.mxu0 0.0
          %519 = vmatprep.subr.mxu0 0.0
          %520 = vmatpush1.msra.mxu0 0.0
          %521 = vmatprep.subr.mxu0 0.0
          %522 = vmatpush1.msra.mxu0 0.0
          %523 = vmatprep.subr.mxu0 0.0
          %524 = vmatpush1.msra.mxu0 0.0
          %525 = vmatprep.subr.mxu0 0.0
          %526 = vmatpush1.msra.mxu0 0.0
          %527 = vmatprep.subr.mxu0 0.0
          %528 = vmatpush1.msra.mxu0 0.0
          %529 = vmatprep.subr.mxu0 0.0
          %530 = vmatpush1.msra.mxu0 0.0
          %531 = vmatprep.subr.mxu0 0.0
          %532 = vmatpush1.msra.mxu0 0.0
          %533 = vmatprep.subr.mxu0 0.0
          %534 = vmatpush1.msra.mxu0 0.0
          %535 = vmatprep.subr.mxu0 0.0
          %536 = vmatpush1.msra.mxu0 0.0
          %537 = vmatprep.subr.mxu0 0.0
          %538 = vmatpush1.msra.mxu0 0.0
          %539 = vmatprep.subr.mxu0 0.0
          %540 = vmatpush1.msra.mxu0 0.0
          %541 = vmatprep.subr.mxu0 0.0
          %542 = vmatpush1.msra.mxu0 0.0
          %543 = vmatprep.mubr.f32.mxu0 0.0
          %544 = vmatmul.mubr.f32.gmra.mrb[0].mxu0 %v477
          %v545 = vpop.f32.mrb[0].mxu0
          %v546 = vadd.f32 0.0, %v545
          %v547 = vpop.f32.mrb[0].mxu0
          %548 = vmatprep.mubr.f32.mxu0 0.0
          %549 = vmatmul.mubr.f32.gmra.mrb[0].mxu0 %v478
          %v550 = vpop.f32.mrb[0].mxu0
          %v551 = vadd.f32 0.0, %v550
          %v552 = vpop.f32.mrb[0].mxu0
          %553 = vdwg.mxu0
          %v554 = vmul.f32 %v443, %v546
          %v555 = vmul.f32 %v445, %v551
          %v556 = vadd.f32 %v554, %v555
          %v557 = vrot.slane %v556, 4
          %v558 = vadd.f32 %v556, %v557
          %v559 = vrot.slane %v558, 2
          %v560 = vadd.f32 %v558, %v559
          %v561 = vrot.slane %v560, 1
          %v562 = vadd.f32 %v560, %v561
          %v563 = vadd.f32 %v474, 1e-07
          %v564 = vrcp.pop %v563
          %v565 = vmul.f32 %v562, %v564
          %s566 = scalar_lea.vmem %s209, %s333 [#allocation2]
          %567 = vst [vmem:[%s566] sm:$0x1] %v565
        $region41: #{tpu_custom_call.1} parent=35 // loop_footer
          %s337 = sadd.s32 1, %s333
        $region42: #{tpu_custom_call.1} parent=35 // loop_footer_branch
          %332 = sbr.rel target = $region38
        $region43: #{tpu_custom_call.1} parent=35 // loop_exit
          _
        %s568 = sand.u32 %s120, 1
        %s569 = scalar_lea.sflag [#allocation3], %s568
        %s570 = sand.u32 %s120, 1
        %s571 = smul.addr %s570, 2
        %s572 = scalar_lea.vmem [#allocation2], %s571
        // Predicated region
        $region44: #{tpu_custom_call.1} parent=35 // pred_check
          %p573 = pneg %p130
        $region45: #{tpu_custom_call.1} parent=35 // pred_check_branch
          %575 = sbr.rel (%p573) target = $region47
        $region46: #{tpu_custom_call.1} parent=35 // pred_region
          %s576 = smul.u32 2, %s18
          %s578 = ssub.s32 32, 32
          %579 = vsyncadd %s569, %s578
          %s580 = smul.addr %s576, 16
          %s581 = scalar_lea.hbm %s4, %s580
          %s582 = sshll.u32 %s572, 4
          %s583 = int_to_ptr.vmem [resolvable:$true] %s582
          %588 = dma.vmem_to_hbm [thread:$0]  %s583, 32, %s581, %s569, 16, 16, 1
        $region47: #{tpu_custom_call.1} parent=35 // pred_fallthru
          _
      $region36: #{tpu_custom_call.1} parent=5 // pred_fallthru
        _
      %p589 = scmp.le.s32.totalorder 2, %s13
      // Predicated region
      $region48: #{tpu_custom_call.1} parent=5 // pred_check
        %p590 = pneg %p589
      $region49: #{tpu_custom_call.1} parent=5 // pred_check_branch
        %592 = sbr.rel (%p590) target = $region51
      $region50: #{tpu_custom_call.1} parent=5 // pred_region
        %s593 = ssub.s32 %s13, 2
        // Predicated region
        $region52: #{tpu_custom_call.1} parent=50 // pred_check
          %p594 = pneg %p136
        $region53: #{tpu_custom_call.1} parent=50 // pred_check_branch
          %596 = sbr.rel (%p594) target = $region55
        $region54: #{tpu_custom_call.1} parent=50 // pred_region
          %s597 = sand.u32 %s121, 1
          %s598 = scalar_lea.sflag [#allocation3], %s597
          %s599 = sand.u32 %s121, 1
          %s600 = smul.addr %s599, 2
          %s601 = scalar_lea.vmem [#allocation2], %s600
          %602 = dma.done %s598, 32
        $region55: #{tpu_custom_call.1} parent=50 // pred_fallthru
          _
      $region51: #{tpu_custom_call.1} parent=5 // pred_fallthru
        _
    $region6: #{tpu_custom_call.1} parent=1 // loop_footer
      %s17 = sadd.s32 1, %s13
    $region7: #{tpu_custom_call.1} parent=1 // loop_footer_branch
      %12 = sbr.rel target = $region3
    $region8: #{tpu_custom_call.1} parent=1 // loop_exit
      _
    %603 = vsyncpa [#allocation3], 1
    %s604 = scalar_lea.sflag [#allocation3], 1
    %605 = vsyncpa %s604, 1

</llo_original>
